<compile_context>
chip_gen: v5e
topology: v5e:2x2
jax: 0.10.0
libtpu: 0.0.40
codegen_flags: <defaults>
</compile_context>

<pallas_src>
import jax
import jax.numpy as jnp
from jax.experimental import pallas as pl
from jax.experimental.pallas import tpu as pltpu

VOCAB = 102                  # content_length (vocab size, padding_idx=1)
EMBED = 32                   # embed_dim (small stand-in for 300)
SEQ = 16                     # max sentence length
FILTER_SIZES = (3, 4, 5)
NUM_FILTERS = (16, 16, 16)   # small stand-in for (100, 100, 100)
NUM_CLASSES = 1
BATCH = 2

KMAX = max(FILTER_SIZES)
SUM_F = sum(NUM_FILTERS)
L_PAD = 32                   # per-sequence segment stride (multiple of 8, >= SEQ)
TAIL = 8                     # >= KMAX-1 extra zero rows so tap slices stay in bounds
E_PAD = 128                  # lane-dense embedding width (>= EMBED)
O_PAD = 128                  # lane-padded fused output-channel count (>= SUM_F)
B_PAD = 8                    # batch padded to a full sublane tile (>= BATCH, mult of 8)
M_ROWS = B_PAD * L_PAD       # matmul M rows (batch folded into M), = 256

assert L_PAD >= SEQ and L_PAD % 8 == 0
assert TAIL >= KMAX - 1 and (M_ROWS + TAIL) % 8 == 0
assert E_PAD >= EMBED and O_PAD >= SUM_F and B_PAD >= BATCH and B_PAD % 8 == 0
# Cross-segment tap contamination: rows with t >= SEQ-K+1 may read the next
# segment's rows through the shifted tap slices; correctness relies on the
# post-ReLU zero mask killing exactly those rows.  Check the mask bound covers
# every row whose taps can cross the 32-row segment boundary.
assert SEQ - min(FILTER_SIZES) + 1 <= L_PAD - (KMAX - 1)


def _textcnn_kernel(x_ref, w_ref, mask_ref, aux_ref, out_ref):
    """Fused conv1d(3 widths) + bias + ReLU + time max-pool + FC head."""
    # Conv as accumulate-over-taps: acc[t, o] = sum_j x[t+j, :] @ W[j].
    # Static unroll; taps j >= filter width are zero rows in the packed weights.
    acc = jnp.dot(x_ref[0:M_ROWS, :], w_ref[0:E_PAD, :],
                  preferred_element_type=jnp.float32)
    for j in range(1, KMAX):
        acc = acc + jnp.dot(x_ref[j:j + M_ROWS, :],
                            w_ref[j * E_PAD:(j + 1) * E_PAD, :],
                            preferred_element_type=jnp.float32)

    # Bias + ReLU, then the precomputed static validity mask (one VPU multiply).
    # Masking with 0 *after* ReLU is safe because valid activations are >= 0;
    # if the activation/pooling ever changes (no ReLU, mean-pool), use -inf.
    acc = jnp.maximum(acc + aux_ref[0:1, :], 0.0) * mask_ref[...]

    # Global max-pool over time: one 32-row segment per (padded) batch element.
    # L_PAD=32 is sublane-aligned, so the reshape is a free re-view.
    pooled = jnp.max(acc.reshape(B_PAD, L_PAD, O_PAD), axis=1)        # (8, 128)

    # dropout(p=0.5) is identity in eval mode.
    # FC head (48 -> 1) as VPU multiply + lane reduce (too small for an MXU push).
    logits = (jnp.sum(pooled * aux_ref[1:2, :], axis=1, keepdims=True)
              + aux_ref[2:3, 0:1])                                    # (8, 1)

    # Lane-dense, full (8, 128) unmasked store; wrapper slices [:BATCH, :1].
    out_ref[...] = jnp.broadcast_to(logits, (B_PAD, O_PAD))


def textcnn_forward(x_embed, packed):
    """x_embed: (B, L, E) float32 embedded tokens. Returns logits (B, C)."""
    w_packed, mask, aux = packed
    B, L, E = x_embed.shape
    assert B == BATCH and L == SEQ and E == EMBED

    # Lane-densify E -> 128 and fold batch into the matmul M dim as zero-padded
    # 32-row segments; TAIL zero rows keep the last segment's tap slices in bounds.
    x_seg = jnp.zeros((B_PAD, L_PAD, E_PAD), jnp.float32).at[:B, :L, :E].set(x_embed)
    x2d = jnp.concatenate(
        [x_seg.reshape(B_PAD * L_PAD, E_PAD),
         jnp.zeros((TAIL, E_PAD), jnp.float32)], axis=0)              # (264, 128)

    # Single-step call: all operands are tiny and whole-array resident in VMEM.
    # Scaling notes (perf review):
    #  * real scale (E=300, 100 filters/width): cast matmul LHS/RHS to bf16 with
    #    preferred_element_type=f32, pad E -> 384, keep each width's channels
    #    128-lane padded (N = 384); keep the post-matmul elementwise epilogue in
    #    f32 (v5e VPU/EUP have no bf16 datapath).
    #  * large batch: grid over batch segments (>= 8 sequences = 256 M-rows per
    #    step on v6e/v7x, >= 4 on v5e) with dimension_semantics=("parallel",) so
    #    v7x's two TensorCores both get work; keep the accumulate-over-taps form
    #    (never a KE-wide im2col slab, v7x has only 64 MiB VMEM) and set
    #    vmem_limit_bytes explicitly via pltpu.CompilerParams.
    out = pl.pallas_call(
        _textcnn_kernel,
        out_shape=jax.ShapeDtypeStruct((B_PAD, O_PAD), jnp.float32),
        in_specs=[pl.BlockSpec(memory_space=pltpu.MemorySpace.VMEM)] * 4,
        out_specs=pl.BlockSpec(memory_space=pltpu.MemorySpace.VMEM),
    )(x2d, w_packed, mask, aux)
    return out[:B, :NUM_CLASSES]                                      # (B, C)


def build_time_mask():
    """Static (M_ROWS, O_PAD) validity mask: 1 for valid conv time rows, else 0."""
    t = jnp.arange(M_ROWS) % L_PAD                        # time index within segment
    col = jnp.arange(O_PAD)
    tmax = jnp.where(
        col < NUM_FILTERS[0], SEQ - FILTER_SIZES[0] + 1,
        jnp.where(col < NUM_FILTERS[0] + NUM_FILTERS[1],
                  SEQ - FILTER_SIZES[1] + 1,
                  SEQ - FILTER_SIZES[2] + 1))
    return (t[:, None] < tmax[None, :]).astype(jnp.float32)


def init_params(key):
    ks = jax.random.split(key, 16)
    emb = jax.random.normal(ks[0], (VOCAB, EMBED), jnp.float32) * 0.1
    emb = emb.at[1].set(0.0)  # padding_idx=1 row is zero, as in nn.Embedding

    def conv_params(kw, kb, ksize, out_ch):
        # torch Conv1d weight is (O, E, K); stored here transposed as (K, E, O)
        w = jax.random.normal(kw, (ksize, EMBED, out_ch), jnp.float32) * 0.05
        b = jax.random.normal(kb, (1, out_ch), jnp.float32) * 0.01
        return w, b

    w3, b3 = conv_params(ks[1], ks[2], FILTER_SIZES[0], NUM_FILTERS[0])
    w4, b4 = conv_params(ks[3], ks[4], FILTER_SIZES[1], NUM_FILTERS[1])
    w5, b5 = conv_params(ks[5], ks[6], FILTER_SIZES[2], NUM_FILTERS[2])

    fcw = jax.random.normal(ks[7], (SUM_F, NUM_CLASSES), jnp.float32) * 0.05
    fcb = jax.random.normal(ks[8], (1, NUM_CLASSES), jnp.float32) * 0.01
    return emb, (w3, b3, w4, b4, w5, b5, fcw, fcb)


def pack_params(params):
    """Fuse conv weights/biases + FC head into lane-padded arrays + static mask."""
    w3, b3, w4, b4, w5, b5, fcw, fcb = params
    w_packed = jnp.zeros((KMAX * E_PAD, O_PAD), jnp.float32)   # rows: tap*E_PAD + e
    b_row = jnp.zeros((O_PAD,), jnp.float32)
    col = 0
    for w, b in ((w3, b3), (w4, b4), (w5, b5)):
        k, e, o = w.shape
        for j in range(k):
            w_packed = w_packed.at[j * E_PAD:j * E_PAD + e, col:col + o].set(w[j])
        b_row = b_row.at[col:col + o].set(b[0])
        col += o
    aux = jnp.zeros((8, O_PAD), jnp.float32)       # full (8,128) tile
    aux = aux.at[0, :].set(b_row)                  # row 0: conv bias (0 in pad lanes)
    aux = aux.at[1, :col].set(fcw[:, 0])           # row 1: FC weights (zero-padded)
    aux = aux.at[2, :].set(fcb[0, 0])              # row 2: FC bias (broadcast)
    return w_packed, build_time_mask(), aux


def reference_forward(input_ids, emb, params):
    """Pure-JAX reference replicating the PyTorch forward (eval mode)."""
    w3, b3, w4, b4, w5, b5, fcw, fcb = params
    x = emb[input_ids]                              # (B, L, E)

    def conv_block(w, b, ksize):
        t_out = x.shape[1] - ksize + 1
        acc = jnp.zeros((x.shape[0], t_out, w.shape[2]), jnp.float32)
        for k in range(ksize):
            acc += jnp.einsum('ble,eo->blo', x[:, k:k + t_out, :], w[k])
        acc = jax.nn.relu(acc + b[None])
        return jnp.max(acc, axis=1)                 # (B, O)

    pooled = jnp.concatenate(
        [conv_block(w3, b3, 3), conv_block(w4, b4, 4), conv_block(w5, b5, 5)],
        axis=1)
    return pooled @ fcw + fcb                       # (B, C)


if __name__ == "__main__":
    key = jax.random.PRNGKey(0)
    k_ids, k_params = jax.random.split(key)

    emb_table, params = init_params(k_params)
    input_ids = jax.random.randint(k_ids, (BATCH, SEQ), 0, VOCAB, dtype=jnp.int32)

    # Embedding lookup (row gather) kept as XLA glue at toy scale.
    # TODO(synk): at real scale fuse the gather via scalar-prefetched token ids +
    # memory_space=pl.ANY embedding table and per-row DMA into a VMEM scratch,
    # which avoids materializing/re-reading x_embed in HBM.
    x_embed = emb_table[input_ids].astype(jnp.float32)       # (B, L, E)

    packed = pack_params(params)
    logits = textcnn_forward(x_embed, packed)                # (B, C)
    logits = jnp.squeeze(logits, axis=1)                     # torch .squeeze() -> (B,)
    logits = jax.block_until_ready(logits)

    ref = jnp.squeeze(reference_forward(input_ids, emb_table, params), axis=1)
    assert logits.shape == (BATCH,)
    assert jnp.allclose(logits, ref, atol=1e-4, rtol=1e-4), (logits, ref)

    print("KERNEL_OK")
</pallas_src>

<mosaic_0001>
module attributes {stable_mosaic.version = 11 : i64} {
  func.func @_textcnn_kernel(%arg0: memref<264x128xf32, #tpu.memory_space<vmem>>, %arg1: memref<640x128xf32, #tpu.memory_space<vmem>>, %arg2: memref<256x128xf32, #tpu.memory_space<vmem>>, %arg3: memref<8x128xf32, #tpu.memory_space<vmem>>, %arg4: memref<8x128xf32, #tpu.memory_space<vmem>>) attributes {dimension_semantics = [], scalar_prefetch = 0 : i64, scratch_operands = 0 : i64, tpu.core_type = #tpu.core_type<tc>} {
    %c0 = arith.constant 0 : index
    %c0_0 = arith.constant 0 : index
    %0 = vector.load %arg0[%c0, %c0_0] : memref<264x128xf32, #tpu.memory_space<vmem>>, vector<256x128xf32>
    %c0_1 = arith.constant 0 : index
    %c0_2 = arith.constant 0 : index
    %1 = vector.load %arg1[%c0_1, %c0_2] : memref<640x128xf32, #tpu.memory_space<vmem>>, vector<128x128xf32>
    %cst = arith.constant dense<0.000000e+00> : vector<256x128xf32>
    %2 = tpu.matmul %0, %1, %cst {dimension_numbers = #tpu.dot_dimension_numbers<[1], [0], [0], [1], [0, 0, 1, 1], [], []>} : vector<256x128xf32>, vector<128x128xf32>, vector<256x128xf32> -> vector<256x128xf32>
    %c1 = arith.constant 1 : index
    %c0_3 = arith.constant 0 : index
    %3 = vector.load %arg0[%c1, %c0_3] : memref<264x128xf32, #tpu.memory_space<vmem>>, vector<256x128xf32>
    %c128 = arith.constant 128 : index
    %c0_4 = arith.constant 0 : index
    %4 = vector.load %arg1[%c128, %c0_4] : memref<640x128xf32, #tpu.memory_space<vmem>>, vector<128x128xf32>
    %cst_5 = arith.constant dense<0.000000e+00> : vector<256x128xf32>
    %5 = tpu.matmul %3, %4, %cst_5 {dimension_numbers = #tpu.dot_dimension_numbers<[1], [0], [0], [1], [0, 0, 1, 1], [], []>} : vector<256x128xf32>, vector<128x128xf32>, vector<256x128xf32> -> vector<256x128xf32>
    %6 = arith.addf %2, %5 : vector<256x128xf32>
    %c2 = arith.constant 2 : index
    %c0_6 = arith.constant 0 : index
    %7 = vector.load %arg0[%c2, %c0_6] : memref<264x128xf32, #tpu.memory_space<vmem>>, vector<256x128xf32>
    %c256 = arith.constant 256 : index
    %c0_7 = arith.constant 0 : index
    %8 = vector.load %arg1[%c256, %c0_7] : memref<640x128xf32, #tpu.memory_space<vmem>>, vector<128x128xf32>
    %cst_8 = arith.constant dense<0.000000e+00> : vector<256x128xf32>
    %9 = tpu.matmul %7, %8, %cst_8 {dimension_numbers = #tpu.dot_dimension_numbers<[1], [0], [0], [1], [0, 0, 1, 1], [], []>} : vector<256x128xf32>, vector<128x128xf32>, vector<256x128xf32> -> vector<256x128xf32>
    %10 = arith.addf %6, %9 : vector<256x128xf32>
    %c3 = arith.constant 3 : index
    %c0_9 = arith.constant 0 : index
    %11 = vector.load %arg0[%c3, %c0_9] : memref<264x128xf32, #tpu.memory_space<vmem>>, vector<256x128xf32>
    %c384 = arith.constant 384 : index
    %c0_10 = arith.constant 0 : index
    %12 = vector.load %arg1[%c384, %c0_10] : memref<640x128xf32, #tpu.memory_space<vmem>>, vector<128x128xf32>
    %cst_11 = arith.constant dense<0.000000e+00> : vector<256x128xf32>
    %13 = tpu.matmul %11, %12, %cst_11 {dimension_numbers = #tpu.dot_dimension_numbers<[1], [0], [0], [1], [0, 0, 1, 1], [], []>} : vector<256x128xf32>, vector<128x128xf32>, vector<256x128xf32> -> vector<256x128xf32>
    %14 = arith.addf %10, %13 : vector<256x128xf32>
    %c4 = arith.constant 4 : index
    %c0_12 = arith.constant 0 : index
    %15 = vector.load %arg0[%c4, %c0_12] : memref<264x128xf32, #tpu.memory_space<vmem>>, vector<256x128xf32>
    %c512 = arith.constant 512 : index
    %c0_13 = arith.constant 0 : index
    %16 = vector.load %arg1[%c512, %c0_13] : memref<640x128xf32, #tpu.memory_space<vmem>>, vector<128x128xf32>
    %cst_14 = arith.constant dense<0.000000e+00> : vector<256x128xf32>
    %17 = tpu.matmul %15, %16, %cst_14 {dimension_numbers = #tpu.dot_dimension_numbers<[1], [0], [0], [1], [0, 0, 1, 1], [], []>} : vector<256x128xf32>, vector<128x128xf32>, vector<256x128xf32> -> vector<256x128xf32>
    %18 = arith.addf %14, %17 : vector<256x128xf32>
    %c0_15 = arith.constant 0 : index
    %c0_16 = arith.constant 0 : index
    %19 = vector.load %arg3[%c0_15, %c0_16] : memref<8x128xf32, #tpu.memory_space<vmem>>, vector<1x128xf32>
    %20 = vector.broadcast %19 : vector<1x128xf32> to vector<256x128xf32>
    %21 = arith.addf %18, %20 : vector<256x128xf32>
    %cst_17 = arith.constant 0.000000e+00 : f32
    %22 = vector.broadcast %cst_17 : f32 to vector<256x128xf32>
    %23 = arith.maximumf %21, %22 : vector<256x128xf32>
    %c0_18 = arith.constant 0 : index
    %c0_19 = arith.constant 0 : index
    %24 = vector.load %arg2[%c0_18, %c0_19] : memref<256x128xf32, #tpu.memory_space<vmem>>, vector<256x128xf32>
    %25 = arith.mulf %23, %24 : vector<256x128xf32>
    %26 = vector.shape_cast %25 : vector<256x128xf32> to vector<8x32x128xf32>
    %cst_20 = arith.constant dense<0xFF800000> : vector<8x128xf32>
    %27 = vector.multi_reduction <maximumf>, %26, %cst_20 [1] : vector<8x32x128xf32> to vector<8x128xf32>
    %c1_21 = arith.constant 1 : index
    %c0_22 = arith.constant 0 : index
    %28 = vector.load %arg3[%c1_21, %c0_22] : memref<8x128xf32, #tpu.memory_space<vmem>>, vector<1x128xf32>
    %29 = vector.broadcast %28 : vector<1x128xf32> to vector<8x128xf32>
    %30 = arith.mulf %27, %29 : vector<8x128xf32>
    %cst_23 = arith.constant dense<0.000000e+00> : vector<8xf32>
    %31 = vector.multi_reduction <add>, %30, %cst_23 [1] : vector<8x128xf32> to vector<8xf32>
    %32 = vector.shape_cast %31 : vector<8xf32> to vector<8x1xf32>
    %c2_24 = arith.constant 2 : index
    %c0_25 = arith.constant 0 : index
    %33 = vector.load %arg3[%c2_24, %c0_25] : memref<8x128xf32, #tpu.memory_space<vmem>>, vector<1x1xf32>
    %34 = vector.broadcast %33 : vector<1x1xf32> to vector<8x1xf32>
    %35 = arith.addf %32, %34 : vector<8x1xf32>
    %36 = vector.shape_cast %35 : vector<8x1xf32> to vector<8x1xf32>
    %37 = vector.broadcast %36 : vector<8x1xf32> to vector<8x128xf32>
    %c0_26 = arith.constant 0 : index
    %c0_27 = arith.constant 0 : index
    %38 = vector.load %arg4[%c0_26, %c0_27] : memref<8x128xf32, #tpu.memory_space<vmem>>, vector<8x128xf32>
    tpu.vector_store %arg4[%c0_26, %c0_27], %37 {strides = array<i32>} : memref<8x128xf32, #tpu.memory_space<vmem>>, vector<8x128xf32>,
    return
  }
}

</mosaic_0001>

<llo_original>
// kernel: tpu_custom_call.1
$region0: #{tpu_custom_call.1}
  #allocation0 [shape = 'u32[]', space=smem, size = 0x4, offset = 0x4, fixed_abs, tag = 'smem constant byte address 0x4 - core index']
  #allocation1 [shape = 'u32[72,128]{1,0:T(1,128)}', space=vmem, size = 0x9000, scoped, tag = 'internal scratch']
  %s0 = inlined_call_operand.hbm [shape: f32[264,128], index: 0, kind: input, shape index: {}]
  %s1 = inlined_call_operand.hbm [shape: f32[640,128], index: 1, kind: input, shape index: {}]
  %s2 = inlined_call_operand.hbm [shape: f32[256,128], index: 2, kind: input, shape index: {}]
  %s3 = inlined_call_operand.hbm [shape: f32[8,128], index: 3, kind: input, shape index: {}]
  %s4 = inlined_call_operand.hbm [shape: f32[8,128], index: 4, kind: output, shape index: {}]
  %s5 = sld [smem:[#allocation0]]
  $region42: #{tpu_custom_call.1} parent=0
    _
  %s7 = ssub.s32 1, %s5
  %s8 = scalar_select 0, %s7, %s5
  $region1: #{tpu_custom_call.1} parent=0
    #allocation2 [shape = 'u8[135168]{0}', space=vmem, size = 0x21000, scoped, tag = 'input window, operand 0, single buffered']
    #allocation3 [shape = 's32[1]{0}', space=sflag, size = 0x4, scoped, tag = 'scoped memory for tpu_custom_call.1']
    #allocation4 [shape = 's32[1]{0}', space=sflag, size = 0x4, scoped, tag = 'scoped memory for tpu_custom_call.1']
    #allocation5 [shape = 'u8[327680]{0}', space=vmem, size = 0x50000, scoped, tag = 'input window, operand 1, single buffered']
    #allocation6 [shape = 's32[1]{0}', space=sflag, size = 0x4, scoped, tag = 'scoped memory for tpu_custom_call.1']
    #allocation7 [shape = 'u8[131072]{0}', space=vmem, size = 0x20000, scoped, tag = 'input window, operand 2, single buffered']
    #allocation8 [shape = 'u8[4096]{0}', space=vmem, size = 0x1000, scoped, tag = 'input window, operand 3, single buffered']
    #allocation9 [shape = 's32[1]{0}', space=sflag, size = 0x4, scoped, tag = 'scoped memory for tpu_custom_call.1']
    #allocation10 [shape = 'u8[4096]{0}', space=vmem, size = 0x1000, scoped, tag = 'output window, operand 0, single buffered']
    %9 = vsyncpa [#allocation3], 0
    %10 = vsyncpa [#allocation6], 0
    %11 = vsyncpa [#allocation9], 0
    %12 = vsyncpa [#allocation4], 0
    // Predicated region
    $region2: #{tpu_custom_call.1} parent=1 // pred_check
      _
    $region3: #{tpu_custom_call.1} parent=1 // pred_check_branch
      %14 = sbr.rel (0) target = $region5
    $region4: #{tpu_custom_call.1} parent=1 // pred_region
      %16 = vsyncadd [#allocation3], 0
      %s17 = sshll.u32 %s0, 4
      %s18 = int_to_ptr.hbm [resolvable:$true] %s17
      %s19 = sshll.u32 [#allocation2], 4
      %s20 = int_to_ptr.vmem [resolvable:$true] %s19
      %25 = dma.hbm_to_vmem [thread:$0]  %s18, 4224, %s20, [#allocation3], 128, 128, 8
    $region5: #{tpu_custom_call.1} parent=1 // pred_fallthru
      _
    // Predicated region
    $region6: #{tpu_custom_call.1} parent=1 // pred_check
      _
    $region7: #{tpu_custom_call.1} parent=1 // pred_check_branch
      %27 = sbr.rel (0) target = $region9
    $region8: #{tpu_custom_call.1} parent=1 // pred_region
      %29 = vsyncadd [#allocation6], 0
      %s30 = sshll.u32 %s1, 4
      %s31 = int_to_ptr.hbm [resolvable:$true] %s30
      %s32 = sshll.u32 [#allocation5], 4
      %s33 = int_to_ptr.vmem [resolvable:$true] %s32
      %38 = dma.hbm_to_vmem [thread:$0]  %s31, 10240, %s33, [#allocation6], 128, 128, 8
    $region9: #{tpu_custom_call.1} parent=1 // pred_fallthru
      _
    // Predicated region
    $region10: #{tpu_custom_call.1} parent=1 // pred_check
      _
    $region11: #{tpu_custom_call.1} parent=1 // pred_check_branch
      %40 = sbr.rel (0) target = $region13
    $region12: #{tpu_custom_call.1} parent=1 // pred_region
      %42 = vsyncadd [#allocation6], 0
      %s43 = sshll.u32 %s2, 4
      %s44 = int_to_ptr.hbm [resolvable:$true] %s43
      %s45 = sshll.u32 [#allocation7], 4
      %s46 = int_to_ptr.vmem [resolvable:$true] %s45
      %51 = dma.hbm_to_vmem [thread:$0]  %s44, 4096, %s46, [#allocation6], 128, 128, 8
    $region13: #{tpu_custom_call.1} parent=1 // pred_fallthru
      _
    // Predicated region
    $region14: #{tpu_custom_call.1} parent=1 // pred_check
      _
    $region15: #{tpu_custom_call.1} parent=1 // pred_check_branch
      %53 = sbr.rel (0) target = $region17
    $region16: #{tpu_custom_call.1} parent=1 // pred_region
      %55 = vsyncadd [#allocation9], 0
      %s57 = sshll.u32 %s3, 4
      %s58 = int_to_ptr.hbm [resolvable:$true] %s57
      %s59 = sshll.u32 [#allocation8], 4
      %s60 = int_to_ptr.vmem [resolvable:$true] %s59
      %62 = dma.hbm_to_vmem [thread:$0]  %s58, 128, %s60, [#allocation9]
    $region17: #{tpu_custom_call.1} parent=1 // pred_fallthru
      _
    // Predicated region
    $region18: #{tpu_custom_call.1} parent=1 // pred_check
      _
    $region19: #{tpu_custom_call.1} parent=1 // pred_check_branch
      %64 = sbr.rel (0) target = $region21
    $region20: #{tpu_custom_call.1} parent=1 // pred_region
      %66 = dma.done [#allocation3], 4224
    $region21: #{tpu_custom_call.1} parent=1 // pred_fallthru
      _
    // Predicated region
    $region22: #{tpu_custom_call.1} parent=1 // pred_check
      _
    $region23: #{tpu_custom_call.1} parent=1 // pred_check_branch
      %68 = sbr.rel (0) target = $region25
    $region24: #{tpu_custom_call.1} parent=1 // pred_region
      %70 = dma.done [#allocation6], 10240
    $region25: #{tpu_custom_call.1} parent=1 // pred_fallthru
      _
    // Predicated region
    $region26: #{tpu_custom_call.1} parent=1 // pred_check
      _
    $region27: #{tpu_custom_call.1} parent=1 // pred_check_branch
      %72 = sbr.rel (0) target = $region29
    $region28: #{tpu_custom_call.1} parent=1 // pred_region
      %74 = dma.done [#allocation6], 4096
    $region29: #{tpu_custom_call.1} parent=1 // pred_fallthru
      _
    // Predicated region
    $region30: #{tpu_custom_call.1} parent=1 // pred_check
      _
    $region31: #{tpu_custom_call.1} parent=1 // pred_check_branch
      %76 = sbr.rel (0) target = $region33
    $region32: #{tpu_custom_call.1} parent=1 // pred_region
      %78 = dma.done [#allocation9], 128
    $region33: #{tpu_custom_call.1} parent=1 // pred_fallthru
      _
    %v79 = vld [vmem:[#allocation2] sm:$0xff]
    %v80 = vld [vmem:[#allocation2 + $0x8] sm:$0xff]
    %v81 = vld [vmem:[#allocation2 + $0x10] sm:$0xff]
    %v82 = vld [vmem:[#allocation2 + $0x18] sm:$0xff]
    %v83 = vld [vmem:[#allocation2 + $0x20] sm:$0xff]
    %v84 = vld [vmem:[#allocation2 + $0x28] sm:$0xff]
    %v85 = vld [vmem:[#allocation2 + $0x30] sm:$0xff]
    %v86 = vld [vmem:[#allocation2 + $0x38] sm:$0xff]
    %v87 = vld [vmem:[#allocation2 + $0x40] sm:$0xff]
    %v88 = vld [vmem:[#allocation2 + $0x48] sm:$0xff]
    %v89 = vld [vmem:[#allocation2 + $0x50] sm:$0xff]
    %v90 = vld [vmem:[#allocation2 + $0x58] sm:$0xff]
    %v91 = vld [vmem:[#allocation2 + $0x60] sm:$0xff]
    %v92 = vld [vmem:[#allocation2 + $0x68] sm:$0xff]
    %v93 = vld [vmem:[#allocation2 + $0x70] sm:$0xff]
    %v94 = vld [vmem:[#allocation2 + $0x78] sm:$0xff]
    %v95 = vld [vmem:[#allocation2 + $0x80] sm:$0xff]
    %v96 = vld [vmem:[#allocation2 + $0x88] sm:$0xff]
    %v97 = vld [vmem:[#allocation2 + $0x90] sm:$0xff]
    %v98 = vld [vmem:[#allocation2 + $0x98] sm:$0xff]
    %v99 = vld [vmem:[#allocation2 + $0xa0] sm:$0xff]
    %v100 = vld [vmem:[#allocation2 + $0xa8] sm:$0xff]
    %v101 = vld [vmem:[#allocation2 + $0xb0] sm:$0xff]
    %v102 = vld [vmem:[#allocation2 + $0xb8] sm:$0xff]
    %v103 = vld [vmem:[#allocation2 + $0xc0] sm:$0xff]
    %v104 = vld [vmem:[#allocation2 + $0xc8] sm:$0xff]
    %v105 = vld [vmem:[#allocation2 + $0xd0] sm:$0xff]
    %v106 = vld [vmem:[#allocation2 + $0xd8] sm:$0xff]
    %v107 = vld [vmem:[#allocation2 + $0xe0] sm:$0xff]
    %v108 = vld [vmem:[#allocation2 + $0xe8] sm:$0xff]
    %v109 = vld [vmem:[#allocation2 + $0xf0] sm:$0xff]
    %v110 = vld [vmem:[#allocation2 + $0xf8] sm:$0xff]
    %v111 = vld [vmem:[#allocation5] sm:$0xff]
    %v112 = vld [vmem:[#allocation5 + $0x8] sm:$0xff]
    %v113 = vld [vmem:[#allocation5 + $0x10] sm:$0xff]
    %v114 = vld [vmem:[#allocation5 + $0x18] sm:$0xff]
    %v115 = vld [vmem:[#allocation5 + $0x20] sm:$0xff]
    %v116 = vld [vmem:[#allocation5 + $0x28] sm:$0xff]
    %v117 = vld [vmem:[#allocation5 + $0x30] sm:$0xff]
    %v118 = vld [vmem:[#allocation5 + $0x38] sm:$0xff]
    %v119 = vld [vmem:[#allocation5 + $0x40] sm:$0xff]
    %v120 = vld [vmem:[#allocation5 + $0x48] sm:$0xff]
    %v121 = vld [vmem:[#allocation5 + $0x50] sm:$0xff]
    %v122 = vld [vmem:[#allocation5 + $0x58] sm:$0xff]
    %v123 = vld [vmem:[#allocation5 + $0x60] sm:$0xff]
    %v124 = vld [vmem:[#allocation5 + $0x68] sm:$0xff]
    %v125 = vld [vmem:[#allocation5 + $0x70] sm:$0xff]
    %v126 = vld [vmem:[#allocation5 + $0x78] sm:$0xff]
    %v127 = vld [vmem:[#allocation2 + $0x1] sm:$0xff]
    %v128 = vld [vmem:[#allocation2 + $0x9] sm:$0xff]
    %v129 = vld [vmem:[#allocation2 + $0x11] sm:$0xff]
    %v130 = vld [vmem:[#allocation2 + $0x19] sm:$0xff]
    %v131 = vld [vmem:[#allocation2 + $0x21] sm:$0xff]
    %v132 = vld [vmem:[#allocation2 + $0x29] sm:$0xff]
    %v133 = vld [vmem:[#allocation2 + $0x31] sm:$0xff]
    %v134 = vld [vmem:[#allocation2 + $0x39] sm:$0xff]
    %v135 = vld [vmem:[#allocation2 + $0x41] sm:$0xff]
    %v136 = vld [vmem:[#allocation2 + $0x49] sm:$0xff]
    %v137 = vld [vmem:[#allocation2 + $0x51] sm:$0xff]
    %v138 = vld [vmem:[#allocation2 + $0x59] sm:$0xff]
    %v139 = vld [vmem:[#allocation2 + $0x61] sm:$0xff]
    %v140 = vld [vmem:[#allocation2 + $0x69] sm:$0xff]
    %v141 = vld [vmem:[#allocation2 + $0x71] sm:$0xff]
    %v142 = vld [vmem:[#allocation2 + $0x79] sm:$0xff]
    %v143 = vld [vmem:[#allocation2 + $0x81] sm:$0xff]
    %v144 = vld [vmem:[#allocation2 + $0x89] sm:$0xff]
    %v145 = vld [vmem:[#allocation2 + $0x91] sm:$0xff]
    %v146 = vld [vmem:[#allocation2 + $0x99] sm:$0xff]
    %v147 = vld [vmem:[#allocation2 + $0xa1] sm:$0xff]
    %v148 = vld [vmem:[#allocation2 + $0xa9] sm:$0xff]
    %v149 = vld [vmem:[#allocation2 + $0xb1] sm:$0xff]
    %v150 = vld [vmem:[#allocation2 + $0xb9] sm:$0xff]
    %v151 = vld [vmem:[#allocation2 + $0xc1] sm:$0xff]
    %v152 = vld [vmem:[#allocation2 + $0xc9] sm:$0xff]
    %v153 = vld [vmem:[#allocation2 + $0xd1] sm:$0xff]
    %v154 = vld [vmem:[#allocation2 + $0xd9] sm:$0xff]
    %v155 = vld [vmem:[#allocation2 + $0xe1] sm:$0xff]
    %v156 = vld [vmem:[#allocation2 + $0xe9] sm:$0xff]
    %v157 = vld [vmem:[#allocation2 + $0xf1] sm:$0xff]
    %v158 = vld [vmem:[#allocation2 + $0xf9] sm:$0xff]
    %v159 = vld [vmem:[#allocation5 + $0x80] sm:$0xff]
    %v160 = vld [vmem:[#allocation5 + $0x88] sm:$0xff]
    %v161 = vld [vmem:[#allocation5 + $0x90] sm:$0xff]
    %v162 = vld [vmem:[#allocation5 + $0x98] sm:$0xff]
    %v163 = vld [vmem:[#allocation5 + $0xa0] sm:$0xff]
    %v164 = vld [vmem:[#allocation5 + $0xa8] sm:$0xff]
    %v165 = vld [vmem:[#allocation5 + $0xb0] sm:$0xff]
    %v166 = vld [vmem:[#allocation5 + $0xb8] sm:$0xff]
    %v167 = vld [vmem:[#allocation5 + $0xc0] sm:$0xff]
    %v168 = vld [vmem:[#allocation5 + $0xc8] sm:$0xff]
    %v169 = vld [vmem:[#allocation5 + $0xd0] sm:$0xff]
    %v170 = vld [vmem:[#allocation5 + $0xd8] sm:$0xff]
    %v171 = vld [vmem:[#allocation5 + $0xe0] sm:$0xff]
    %v172 = vld [vmem:[#allocation5 + $0xe8] sm:$0xff]
    %v173 = vld [vmem:[#allocation5 + $0xf0] sm:$0xff]
    %v174 = vld [vmem:[#allocation5 + $0xf8] sm:$0xff]
    %175 = vmatpush.msra.mxu0 %v174
    %176 = vmatpush.msra.mxu0 %v173
    %177 = vmatpush.msra.mxu0 %v172
    %178 = vmatpush.msra.mxu0 %v171
    %179 = vmatpush.msra.mxu0 %v170
    %180 = vmatpush.msra.mxu0 %v169
    %181 = vmatpush.msra.mxu0 %v168
    %182 = vmatpush.msra.mxu0 %v167
    %183 = vmatpush.msra.mxu0 %v166
    %184 = vmatpush.msra.mxu0 %v165
    %185 = vmatpush.msra.mxu0 %v164
    %186 = vmatpush.msra.mxu0 %v163
    %187 = vmatpush.msra.mxu0 %v162
    %188 = vmatpush.msra.mxu0 %v161
    %189 = vmatpush.msra.mxu0 %v160
    %190 = vmatpush.msra.mxu0 %v159
    %191 = vmatmul.f32.gmra.mxu0 %v127
    %v192 = vpop.f32.mrf.mxu0
    %v193 = vadd.f32 0.0, %v192
    %194 = vmatmul.f32.gmra.mxu0 %v128
    %v195 = vpop.f32.mrf.mxu0
    %v196 = vadd.f32 0.0, %v195
    %197 = vmatmul.f32.gmra.mxu0 %v129
    %v198 = vpop.f32.mrf.mxu0
    %v199 = vadd.f32 0.0, %v198
    %200 = vmatmul.f32.gmra.mxu0 %v130
    %v201 = vpop.f32.mrf.mxu0
    %v202 = vadd.f32 0.0, %v201
    %203 = vmatmul.f32.gmra.mxu0 %v131
    %v204 = vpop.f32.mrf.mxu0
    %v205 = vadd.f32 0.0, %v204
    %206 = vmatmul.f32.gmra.mxu0 %v132
    %v207 = vpop.f32.mrf.mxu0
    %v208 = vadd.f32 0.0, %v207
    %209 = vmatmul.f32.gmra.mxu0 %v133
    %v210 = vpop.f32.mrf.mxu0
    %v211 = vadd.f32 0.0, %v210
    %212 = vmatmul.f32.gmra.mxu0 %v134
    %v213 = vpop.f32.mrf.mxu0
    %v214 = vadd.f32 0.0, %v213
    %215 = vmatmul.f32.gmra.mxu0 %v135
    %v216 = vpop.f32.mrf.mxu0
    %v217 = vadd.f32 0.0, %v216
    %218 = vmatmul.f32.gmra.mxu0 %v136
    %v219 = vpop.f32.mrf.mxu0
    %v220 = vadd.f32 0.0, %v219
    %221 = vmatmul.f32.gmra.mxu0 %v137
    %v222 = vpop.f32.mrf.mxu0
    %v223 = vadd.f32 0.0, %v222
    %224 = vmatmul.f32.gmra.mxu0 %v138
    %v225 = vpop.f32.mrf.mxu0
    %v226 = vadd.f32 0.0, %v225
    %227 = vmatmul.f32.gmra.mxu0 %v139
    %v228 = vpop.f32.mrf.mxu0
    %v229 = vadd.f32 0.0, %v228
    %230 = vmatmul.f32.gmra.mxu0 %v140
    %v231 = vpop.f32.mrf.mxu0
    %v232 = vadd.f32 0.0, %v231
    %233 = vmatmul.f32.gmra.mxu0 %v141
    %v234 = vpop.f32.mrf.mxu0
    %v235 = vadd.f32 0.0, %v234
    %236 = vmatmul.f32.gmra.mxu0 %v142
    %v237 = vpop.f32.mrf.mxu0
    %v238 = vadd.f32 0.0, %v237
    %239 = vmatmul.f32.gmra.mxu0 %v143
    %v240 = vpop.f32.mrf.mxu0
    %v241 = vadd.f32 0.0, %v240
    %242 = vmatmul.f32.gmra.mxu0 %v144
    %v243 = vpop.f32.mrf.mxu0
    %v244 = vadd.f32 0.0, %v243
    %245 = vmatmul.f32.gmra.mxu0 %v145
    %v246 = vpop.f32.mrf.mxu0
    %v247 = vadd.f32 0.0, %v246
    %248 = vmatmul.f32.gmra.mxu0 %v146
    %v249 = vpop.f32.mrf.mxu0
    %v250 = vadd.f32 0.0, %v249
    %251 = vmatmul.f32.gmra.mxu0 %v147
    %v252 = vpop.f32.mrf.mxu0
    %v253 = vadd.f32 0.0, %v252
    %254 = vmatmul.f32.gmra.mxu0 %v148
    %v255 = vpop.f32.mrf.mxu0
    %v256 = vadd.f32 0.0, %v255
    %257 = vmatmul.f32.gmra.mxu0 %v149
    %v258 = vpop.f32.mrf.mxu0
    %v259 = vadd.f32 0.0, %v258
    %260 = vmatmul.f32.gmra.mxu0 %v150
    %v261 = vpop.f32.mrf.mxu0
    %v262 = vadd.f32 0.0, %v261
    %263 = vmatmul.f32.gmra.mxu0 %v151
    %v264 = vpop.f32.mrf.mxu0
    %v265 = vadd.f32 0.0, %v264
    %266 = vmatmul.f32.gmra.mxu0 %v152
    %v267 = vpop.f32.mrf.mxu0
    %v268 = vadd.f32 0.0, %v267
    %269 = vmatmul.f32.gmra.mxu0 %v153
    %v270 = vpop.f32.mrf.mxu0
    %v271 = vadd.f32 0.0, %v270
    %272 = vmatmul.f32.gmra.mxu0 %v154
    %v273 = vpop.f32.mrf.mxu0
    %v274 = vadd.f32 0.0, %v273
    %275 = vmatmul.f32.gmra.mxu0 %v155
    %v276 = vpop.f32.mrf.mxu0
    %v277 = vadd.f32 0.0, %v276
    %278 = vmatmul.f32.gmra.mxu0 %v156
    %v279 = vpop.f32.mrf.mxu0
    %v280 = vadd.f32 0.0, %v279
    %281 = vmatmul.f32.gmra.mxu0 %v157
    %v282 = vpop.f32.mrf.mxu0
    %v283 = vadd.f32 0.0, %v282
    %284 = vmatmul.f32.gmra.mxu0 %v158
    %v285 = vpop.f32.mrf.mxu0
    %v286 = vadd.f32 0.0, %v285
    %287 = vdwg.mxu0
    %288 = vmatpush.msra.mxu0 %v126
    %289 = vmatpush.msra.mxu0 %v125
    %290 = vmatpush.msra.mxu0 %v124
    %291 = vmatpush.msra.mxu0 %v123
    %292 = vmatpush.msra.mxu0 %v122
    %293 = vmatpush.msra.mxu0 %v121
    %294 = vmatpush.msra.mxu0 %v120
    %295 = vmatpush.msra.mxu0 %v119
    %296 = vmatpush.msra.mxu0 %v118
    %297 = vmatpush.msra.mxu0 %v117
    %298 = vmatpush.msra.mxu0 %v116
    %299 = vmatpush.msra.mxu0 %v115
    %300 = vmatpush.msra.mxu0 %v114
    %301 = vmatpush.msra.mxu0 %v113
    %302 = vmatpush.msra.mxu0 %v112
    %303 = vmatpush.msra.mxu0 %v111
    %304 = vmatmul.f32.gmra.mxu0 %v79
    %v305 = vpop.f32.mrf.mxu0
    %v306 = vadd.f32 %v193, %v305
    %307 = vmatmul.f32.gmra.mxu0 %v80
    %v308 = vpop.f32.mrf.mxu0
    %v309 = vadd.f32 %v196, %v308
    %310 = vmatmul.f32.gmra.mxu0 %v81
    %v311 = vpop.f32.mrf.mxu0
    %v312 = vadd.f32 %v199, %v311
    %313 = vmatmul.f32.gmra.mxu0 %v82
    %v314 = vpop.f32.mrf.mxu0
    %v315 = vadd.f32 %v202, %v314
    %316 = vmatmul.f32.gmra.mxu0 %v83
    %v317 = vpop.f32.mrf.mxu0
    %v318 = vadd.f32 %v205, %v317
    %319 = vmatmul.f32.gmra.mxu0 %v84
    %v320 = vpop.f32.mrf.mxu0
    %v321 = vadd.f32 %v208, %v320
    %322 = vmatmul.f32.gmra.mxu0 %v85
    %v323 = vpop.f32.mrf.mxu0
    %v324 = vadd.f32 %v211, %v323
    %325 = vmatmul.f32.gmra.mxu0 %v86
    %v326 = vpop.f32.mrf.mxu0
    %v327 = vadd.f32 %v214, %v326
    %328 = vmatmul.f32.gmra.mxu0 %v87
    %v329 = vpop.f32.mrf.mxu0
    %v330 = vadd.f32 %v217, %v329
    %331 = vmatmul.f32.gmra.mxu0 %v88
    %v332 = vpop.f32.mrf.mxu0
    %v333 = vadd.f32 %v220, %v332
    %334 = vmatmul.f32.gmra.mxu0 %v89
    %v335 = vpop.f32.mrf.mxu0
    %v336 = vadd.f32 %v223, %v335
    %337 = vmatmul.f32.gmra.mxu0 %v90
    %v338 = vpop.f32.mrf.mxu0
    %v339 = vadd.f32 %v226, %v338
    %340 = vmatmul.f32.gmra.mxu0 %v91
    %v341 = vpop.f32.mrf.mxu0
    %v342 = vadd.f32 %v229, %v341
    %343 = vmatmul.f32.gmra.mxu0 %v92
    %v344 = vpop.f32.mrf.mxu0
    %v345 = vadd.f32 %v232, %v344
    %346 = vmatmul.f32.gmra.mxu0 %v93
    %v347 = vpop.f32.mrf.mxu0
    %v348 = vadd.f32 %v235, %v347
    %349 = vmatmul.f32.gmra.mxu0 %v94
    %v350 = vpop.f32.mrf.mxu0
    %v351 = vadd.f32 %v238, %v350
    %352 = vmatmul.f32.gmra.mxu0 %v95
    %v353 = vpop.f32.mrf.mxu0
    %v354 = vadd.f32 %v241, %v353
    %355 = vmatmul.f32.gmra.mxu0 %v96
    %v356 = vpop.f32.mrf.mxu0
    %v357 = vadd.f32 %v244, %v356
    %358 = vmatmul.f32.gmra.mxu0 %v97
    %v359 = vpop.f32.mrf.mxu0
    %v360 = vadd.f32 %v247, %v359
    %361 = vmatmul.f32.gmra.mxu0 %v98
    %v362 = vpop.f32.mrf.mxu0
    %v363 = vadd.f32 %v250, %v362
    %364 = vmatmul.f32.gmra.mxu0 %v99
    %v365 = vpop.f32.mrf.mxu0
    %v366 = vadd.f32 %v253, %v365
    %367 = vmatmul.f32.gmra.mxu0 %v100
    %v368 = vpop.f32.mrf.mxu0
    %v369 = vadd.f32 %v256, %v368
    %370 = vmatmul.f32.gmra.mxu0 %v101
    %v371 = vpop.f32.mrf.mxu0
    %v372 = vadd.f32 %v259, %v371
    %373 = vmatmul.f32.gmra.mxu0 %v102
    %v374 = vpop.f32.mrf.mxu0
    %v375 = vadd.f32 %v262, %v374
    %376 = vmatmul.f32.gmra.mxu0 %v103
    %v377 = vpop.f32.mrf.mxu0
    %v378 = vadd.f32 %v265, %v377
    %379 = vmatmul.f32.gmra.mxu0 %v104
    %v380 = vpop.f32.mrf.mxu0
    %v381 = vadd.f32 %v268, %v380
    %382 = vmatmul.f32.gmra.mxu0 %v105
    %v383 = vpop.f32.mrf.mxu0
    %v384 = vadd.f32 %v271, %v383
    %385 = vmatmul.f32.gmra.mxu0 %v106
    %v386 = vpop.f32.mrf.mxu0
    %v387 = vadd.f32 %v274, %v386
    %388 = vmatmul.f32.gmra.mxu0 %v107
    %v389 = vpop.f32.mrf.mxu0
    %v390 = vadd.f32 %v277, %v389
    %391 = vmatmul.f32.gmra.mxu0 %v108
    %v392 = vpop.f32.mrf.mxu0
    %v393 = vadd.f32 %v280, %v392
    %394 = vmatmul.f32.gmra.mxu0 %v109
    %v395 = vpop.f32.mrf.mxu0
    %v396 = vadd.f32 %v283, %v395
    %397 = vmatmul.f32.gmra.mxu0 %v110
    %v398 = vpop.f32.mrf.mxu0
    %v399 = vadd.f32 %v286, %v398
    %400 = vdwg.mxu0
    %v401 = vld [vmem:[#allocation2 + $0x2] sm:$0xff]
    %v402 = vld [vmem:[#allocation2 + $0xa] sm:$0xff]
    %v403 = vld [vmem:[#allocation2 + $0x12] sm:$0xff]
    %v404 = vld [vmem:[#allocation2 + $0x1a] sm:$0xff]
    %v405 = vld [vmem:[#allocation2 + $0x22] sm:$0xff]
    %v406 = vld [vmem:[#allocation2 + $0x2a] sm:$0xff]
    %v407 = vld [vmem:[#allocation2 + $0x32] sm:$0xff]
    %v408 = vld [vmem:[#allocation2 + $0x3a] sm:$0xff]
    %v409 = vld [vmem:[#allocation2 + $0x42] sm:$0xff]
    %v410 = vld [vmem:[#allocation2 + $0x4a] sm:$0xff]
    %v411 = vld [vmem:[#allocation2 + $0x52] sm:$0xff]
    %v412 = vld [vmem:[#allocation2 + $0x5a] sm:$0xff]
    %v413 = vld [vmem:[#allocation2 + $0x62] sm:$0xff]
    %v414 = vld [vmem:[#allocation2 + $0x6a] sm:$0xff]
    %v415 = vld [vmem:[#allocation2 + $0x72] sm:$0xff]
    %v416 = vld [vmem:[#allocation2 + $0x7a] sm:$0xff]
    %v417 = vld [vmem:[#allocation2 + $0x82] sm:$0xff]
    %v418 = vld [vmem:[#allocation2 + $0x8a] sm:$0xff]
    %v419 = vld [vmem:[#allocation2 + $0x92] sm:$0xff]
    %v420 = vld [vmem:[#allocation2 + $0x9a] sm:$0xff]
    %v421 = vld [vmem:[#allocation2 + $0xa2] sm:$0xff]
    %v422 = vld [vmem:[#allocation2 + $0xaa] sm:$0xff]
    %v423 = vld [vmem:[#allocation2 + $0xb2] sm:$0xff]
    %v424 = vld [vmem:[#allocation2 + $0xba] sm:$0xff]
    %v425 = vld [vmem:[#allocation2 + $0xc2] sm:$0xff]
    %v426 = vld [vmem:[#allocation2 + $0xca] sm:$0xff]
    %v427 = vld [vmem:[#allocation2 + $0xd2] sm:$0xff]
    %v428 = vld [vmem:[#allocation2 + $0xda] sm:$0xff]
    %v429 = vld [vmem:[#allocation2 + $0xe2] sm:$0xff]
    %v430 = vld [vmem:[#allocation2 + $0xea] sm:$0xff]
    %v431 = vld [vmem:[#allocation2 + $0xf2] sm:$0xff]
    %v432 = vld [vmem:[#allocation2 + $0xfa] sm:$0xff]
    %v433 = vld [vmem:[#allocation5 + $0x100] sm:$0xff]
    %v434 = vld [vmem:[#allocation5 + $0x108] sm:$0xff]
    %v435 = vld [vmem:[#allocation5 + $0x110] sm:$0xff]
    %v436 = vld [vmem:[#allocation5 + $0x118] sm:$0xff]
    %v437 = vld [vmem:[#allocation5 + $0x120] sm:$0xff]
    %v438 = vld [vmem:[#allocation5 + $0x128] sm:$0xff]
    %v439 = vld [vmem:[#allocation5 + $0x130] sm:$0xff]
    %v440 = vld [vmem:[#allocation5 + $0x138] sm:$0xff]
    %v441 = vld [vmem:[#allocation5 + $0x140] sm:$0xff]
    %v442 = vld [vmem:[#allocation5 + $0x148] sm:$0xff]
    %v443 = vld [vmem:[#allocation5 + $0x150] sm:$0xff]
    %v444 = vld [vmem:[#allocation5 + $0x158] sm:$0xff]
    %v445 = vld [vmem:[#allocation5 + $0x160] sm:$0xff]
    %v446 = vld [vmem:[#allocation5 + $0x168] sm:$0xff]
    %v447 = vld [vmem:[#allocation5 + $0x170] sm:$0xff]
    %v448 = vld [vmem:[#allocation5 + $0x178] sm:$0xff]
    %449 = vmatpush.msra.mxu0 %v448
    %450 = vmatpush.msra.mxu0 %v447
    %451 = vmatpush.msra.mxu0 %v446
    %452 = vmatpush.msra.mxu0 %v445
    %453 = vmatpush.msra.mxu0 %v444
    %454 = vmatpush.msra.mxu0 %v443
    %455 = vmatpush.msra.mxu0 %v442
    %456 = vmatpush.msra.mxu0 %v441
    %457 = vmatpush.msra.mxu0 %v440
    %458 = vmatpush.msra.mxu0 %v439
    %459 = vmatpush.msra.mxu0 %v438
    %460 = vmatpush.msra.mxu0 %v437
    %461 = vmatpush.msra.mxu0 %v436
    %462 = vmatpush.msra.mxu0 %v435
    %463 = vmatpush.msra.mxu0 %v434
    %464 = vmatpush.msra.mxu0 %v433
    %465 = vmatmul.f32.gmra.mxu0 %v401
    %v466 = vpop.f32.mrf.mxu0
    %v467 = vadd.f32 0.0, %v466
    %468 = vmatmul.f32.gmra.mxu0 %v402
    %v469 = vpop.f32.mrf.mxu0
    %v470 = vadd.f32 0.0, %v469
    %471 = vmatmul.f32.gmra.mxu0 %v403
    %v472 = vpop.f32.mrf.mxu0
    %v473 = vadd.f32 0.0, %v472
    %474 = vmatmul.f32.gmra.mxu0 %v404
    %v475 = vpop.f32.mrf.mxu0
    %v476 = vadd.f32 0.0, %v475
    %477 = vmatmul.f32.gmra.mxu0 %v405
    %v478 = vpop.f32.mrf.mxu0
    %v479 = vadd.f32 0.0, %v478
    %480 = vmatmul.f32.gmra.mxu0 %v406
    %v481 = vpop.f32.mrf.mxu0
    %v482 = vadd.f32 0.0, %v481
    %483 = vmatmul.f32.gmra.mxu0 %v407
    %v484 = vpop.f32.mrf.mxu0
    %v485 = vadd.f32 0.0, %v484
    %486 = vmatmul.f32.gmra.mxu0 %v408
    %v487 = vpop.f32.mrf.mxu0
    %v488 = vadd.f32 0.0, %v487
    %489 = vmatmul.f32.gmra.mxu0 %v409
    %v490 = vpop.f32.mrf.mxu0
    %v491 = vadd.f32 0.0, %v490
    %492 = vmatmul.f32.gmra.mxu0 %v410
    %v493 = vpop.f32.mrf.mxu0
    %v494 = vadd.f32 0.0, %v493
    %495 = vmatmul.f32.gmra.mxu0 %v411
    %v496 = vpop.f32.mrf.mxu0
    %v497 = vadd.f32 0.0, %v496
    %498 = vmatmul.f32.gmra.mxu0 %v412
    %v499 = vpop.f32.mrf.mxu0
    %v500 = vadd.f32 0.0, %v499
    %501 = vmatmul.f32.gmra.mxu0 %v413
    %v502 = vpop.f32.mrf.mxu0
    %v503 = vadd.f32 0.0, %v502
    %504 = vmatmul.f32.gmra.mxu0 %v414
    %v505 = vpop.f32.mrf.mxu0
    %v506 = vadd.f32 0.0, %v505
    %507 = vmatmul.f32.gmra.mxu0 %v415
    %v508 = vpop.f32.mrf.mxu0
    %v509 = vadd.f32 0.0, %v508
    %510 = vmatmul.f32.gmra.mxu0 %v416
    %v511 = vpop.f32.mrf.mxu0
    %v512 = vadd.f32 0.0, %v511
    %513 = vmatmul.f32.gmra.mxu0 %v417
    %v514 = vpop.f32.mrf.mxu0
    %v515 = vadd.f32 0.0, %v514
    %516 = vmatmul.f32.gmra.mxu0 %v418
    %v517 = vpop.f32.mrf.mxu0
    %v518 = vadd.f32 0.0, %v517
    %519 = vmatmul.f32.gmra.mxu0 %v419
    %v520 = vpop.f32.mrf.mxu0
    %v521 = vadd.f32 0.0, %v520
    %522 = vmatmul.f32.gmra.mxu0 %v420
    %v523 = vpop.f32.mrf.mxu0
    %v524 = vadd.f32 0.0, %v523
    %525 = vmatmul.f32.gmra.mxu0 %v421
    %v526 = vpop.f32.mrf.mxu0
    %v527 = vadd.f32 0.0, %v526
    %528 = vmatmul.f32.gmra.mxu0 %v422
    %v529 = vpop.f32.mrf.mxu0
    %v530 = vadd.f32 0.0, %v529
    %531 = vmatmul.f32.gmra.mxu0 %v423
    %v532 = vpop.f32.mrf.mxu0
    %v533 = vadd.f32 0.0, %v532
    %534 = vmatmul.f32.gmra.mxu0 %v424
    %v535 = vpop.f32.mrf.mxu0
    %v536 = vadd.f32 0.0, %v535
    %537 = vmatmul.f32.gmra.mxu0 %v425
    %v538 = vpop.f32.mrf.mxu0
    %v539 = vadd.f32 0.0, %v538
    %540 = vmatmul.f32.gmra.mxu0 %v426
    %v541 = vpop.f32.mrf.mxu0
    %v542 = vadd.f32 0.0, %v541
    %543 = vmatmul.f32.gmra.mxu0 %v427
    %v544 = vpop.f32.mrf.mxu0
    %v545 = vadd.f32 0.0, %v544
    %546 = vmatmul.f32.gmra.mxu0 %v428
    %v547 = vpop.f32.mrf.mxu0
    %v548 = vadd.f32 0.0, %v547
    %549 = vmatmul.f32.gmra.mxu0 %v429
    %v550 = vpop.f32.mrf.mxu0
    %v551 = vadd.f32 0.0, %v550
    %552 = vmatmul.f32.gmra.mxu0 %v430
    %v553 = vpop.f32.mrf.mxu0
    %v554 = vadd.f32 0.0, %v553
    %555 = vmatmul.f32.gmra.mxu0 %v431
    %v556 = vpop.f32.mrf.mxu0
    %v557 = vadd.f32 0.0, %v556
    %558 = vmatmul.f32.gmra.mxu0 %v432
    %v559 = vpop.f32.mrf.mxu0
    %v560 = vadd.f32 0.0, %v559
    %561 = vdwg.mxu0
    %v562 = vadd.f32 %v306, %v467
    %v563 = vadd.f32 %v309, %v470
    %v564 = vadd.f32 %v312, %v473
    %v565 = vadd.f32 %v315, %v476
    %v566 = vadd.f32 %v318, %v479
    %v567 = vadd.f32 %v321, %v482
    %v568 = vadd.f32 %v324, %v485
    %v569 = vadd.f32 %v327, %v488
    %v570 = vadd.f32 %v330, %v491
    %v571 = vadd.f32 %v333, %v494
    %v572 = vadd.f32 %v336, %v497
    %v573 = vadd.f32 %v339, %v500
    %v574 = vadd.f32 %v342, %v503
    %v575 = vadd.f32 %v345, %v506
    %v576 = vadd.f32 %v348, %v509
    %v577 = vadd.f32 %v351, %v512
    %v578 = vadd.f32 %v354, %v515
    %v579 = vadd.f32 %v357, %v518
    %v580 = vadd.f32 %v360, %v521
    %v581 = vadd.f32 %v363, %v524
    %v582 = vadd.f32 %v366, %v527
    %v583 = vadd.f32 %v369, %v530
    %v584 = vadd.f32 %v372, %v533
    %v585 = vadd.f32 %v375, %v536
    %v586 = vadd.f32 %v378, %v539
    %v587 = vadd.f32 %v381, %v542
    %v588 = vadd.f32 %v384, %v545
    %v589 = vadd.f32 %v387, %v548
    %v590 = vadd.f32 %v390, %v551
    %v591 = vadd.f32 %v393, %v554
    %v592 = vadd.f32 %v396, %v557
    %v593 = vadd.f32 %v399, %v560
    %v594 = vld [vmem:[#allocation2 + $0x3] sm:$0xff]
    %v595 = vld [vmem:[#allocation2 + $0xb] sm:$0xff]
    %v596 = vld [vmem:[#allocation2 + $0x13] sm:$0xff]
    %v597 = vld [vmem:[#allocation2 + $0x1b] sm:$0xff]
    %v598 = vld [vmem:[#allocation2 + $0x23] sm:$0xff]
    %v599 = vld [vmem:[#allocation2 + $0x2b] sm:$0xff]
    %v600 = vld [vmem:[#allocation2 + $0x33] sm:$0xff]
    %v601 = vld [vmem:[#allocation2 + $0x3b] sm:$0xff]
    %v602 = vld [vmem:[#allocation2 + $0x43] sm:$0xff]
    %v603 = vld [vmem:[#allocation2 + $0x4b] sm:$0xff]
    %v604 = vld [vmem:[#allocation2 + $0x53] sm:$0xff]
    %v605 = vld [vmem:[#allocation2 + $0x5b] sm:$0xff]
    %v606 = vld [vmem:[#allocation2 + $0x63] sm:$0xff]
    %v607 = vld [vmem:[#allocation2 + $0x6b] sm:$0xff]
    %v608 = vld [vmem:[#allocation2 + $0x73] sm:$0xff]
    %v609 = vld [vmem:[#allocation2 + $0x7b] sm:$0xff]
    %v610 = vld [vmem:[#allocation2 + $0x83] sm:$0xff]
    %v611 = vld [vmem:[#allocation2 + $0x8b] sm:$0xff]
    %v612 = vld [vmem:[#allocation2 + $0x93] sm:$0xff]
    %v613 = vld [vmem:[#allocation2 + $0x9b] sm:$0xff]
    %v614 = vld [vmem:[#allocation2 + $0xa3] sm:$0xff]
    %v615 = vld [vmem:[#allocation2 + $0xab] sm:$0xff]
    %v616 = vld [vmem:[#allocation2 + $0xb3] sm:$0xff]
    %v617 = vld [vmem:[#allocation2 + $0xbb] sm:$0xff]
    %v618 = vld [vmem:[#allocation2 + $0xc3] sm:$0xff]
    %v619 = vld [vmem:[#allocation2 + $0xcb] sm:$0xff]
    %v620 = vld [vmem:[#allocation2 + $0xd3] sm:$0xff]
    %v621 = vld [vmem:[#allocation2 + $0xdb] sm:$0xff]
    %v622 = vld [vmem:[#allocation2 + $0xe3] sm:$0xff]
    %v623 = vld [vmem:[#allocation2 + $0xeb] sm:$0xff]
    %v624 = vld [vmem:[#allocation2 + $0xf3] sm:$0xff]
    %v625 = vld [vmem:[#allocation2 + $0xfb] sm:$0xff]
    %v626 = vld [vmem:[#allocation5 + $0x180] sm:$0xff]
    %v627 = vld [vmem:[#allocation5 + $0x188] sm:$0xff]
    %v628 = vld [vmem:[#allocation5 + $0x190] sm:$0xff]
    %v629 = vld [vmem:[#allocation5 + $0x198] sm:$0xff]
    %v630 = vld [vmem:[#allocation5 + $0x1a0] sm:$0xff]
    %v631 = vld [vmem:[#allocation5 + $0x1a8] sm:$0xff]
    %v632 = vld [vmem:[#allocation5 + $0x1b0] sm:$0xff]
    %v633 = vld [vmem:[#allocation5 + $0x1b8] sm:$0xff]
    %v634 = vld [vmem:[#allocation5 + $0x1c0] sm:$0xff]
    %v635 = vld [vmem:[#allocation5 + $0x1c8] sm:$0xff]
    %v636 = vld [vmem:[#allocation5 + $0x1d0] sm:$0xff]
    %v637 = vld [vmem:[#allocation5 + $0x1d8] sm:$0xff]
    %v638 = vld [vmem:[#allocation5 + $0x1e0] sm:$0xff]
    %v639 = vld [vmem:[#allocation5 + $0x1e8] sm:$0xff]
    %v640 = vld [vmem:[#allocation5 + $0x1f0] sm:$0xff]
    %v641 = vld [vmem:[#allocation5 + $0x1f8] sm:$0xff]
    %642 = vmatpush.msra.mxu0 %v641
    %643 = vmatpush.msra.mxu0 %v640
    %644 = vmatpush.msra.mxu0 %v639
    %645 = vmatpush.msra.mxu0 %v638
    %646 = vmatpush.msra.mxu0 %v637
    %647 = vmatpush.msra.mxu0 %v636
    %648 = vmatpush.msra.mxu0 %v635
    %649 = vmatpush.msra.mxu0 %v634
    %650 = vmatpush.msra.mxu0 %v633
    %651 = vmatpush.msra.mxu0 %v632
    %652 = vmatpush.msra.mxu0 %v631
    %653 = vmatpush.msra.mxu0 %v630
    %654 = vmatpush.msra.mxu0 %v629
    %655 = vmatpush.msra.mxu0 %v628
    %656 = vmatpush.msra.mxu0 %v627
    %657 = vmatpush.msra.mxu0 %v626
    %658 = vmatmul.f32.gmra.mxu0 %v594
    %v659 = vpop.f32.mrf.mxu0
    %v660 = vadd.f32 0.0, %v659
    %661 = vmatmul.f32.gmra.mxu0 %v595
    %v662 = vpop.f32.mrf.mxu0
    %v663 = vadd.f32 0.0, %v662
    %664 = vmatmul.f32.gmra.mxu0 %v596
    %v665 = vpop.f32.mrf.mxu0
    %v666 = vadd.f32 0.0, %v665
    %667 = vmatmul.f32.gmra.mxu0 %v597
    %v668 = vpop.f32.mrf.mxu0
    %v669 = vadd.f32 0.0, %v668
    %670 = vmatmul.f32.gmra.mxu0 %v598
    %v671 = vpop.f32.mrf.mxu0
    %v672 = vadd.f32 0.0, %v671
    %673 = vmatmul.f32.gmra.mxu0 %v599
    %v674 = vpop.f32.mrf.mxu0
    %v675 = vadd.f32 0.0, %v674
    %676 = vmatmul.f32.gmra.mxu0 %v600
    %v677 = vpop.f32.mrf.mxu0
    %v678 = vadd.f32 0.0, %v677
    %679 = vmatmul.f32.gmra.mxu0 %v601
    %v680 = vpop.f32.mrf.mxu0
    %v681 = vadd.f32 0.0, %v680
    %682 = vmatmul.f32.gmra.mxu0 %v602
    %v683 = vpop.f32.mrf.mxu0
    %v684 = vadd.f32 0.0, %v683
    %685 = vmatmul.f32.gmra.mxu0 %v603
    %v686 = vpop.f32.mrf.mxu0
    %v687 = vadd.f32 0.0, %v686
    %688 = vmatmul.f32.gmra.mxu0 %v604
    %v689 = vpop.f32.mrf.mxu0
    %v690 = vadd.f32 0.0, %v689
    %691 = vmatmul.f32.gmra.mxu0 %v605
    %v692 = vpop.f32.mrf.mxu0
    %v693 = vadd.f32 0.0, %v692
    %694 = vmatmul.f32.gmra.mxu0 %v606
    %v695 = vpop.f32.mrf.mxu0
    %v696 = vadd.f32 0.0, %v695
    %697 = vmatmul.f32.gmra.mxu0 %v607
    %v698 = vpop.f32.mrf.mxu0
    %v699 = vadd.f32 0.0, %v698
    %700 = vmatmul.f32.gmra.mxu0 %v608
    %v701 = vpop.f32.mrf.mxu0
    %v702 = vadd.f32 0.0, %v701
    %703 = vmatmul.f32.gmra.mxu0 %v609
    %v704 = vpop.f32.mrf.mxu0
    %v705 = vadd.f32 0.0, %v704
    %706 = vmatmul.f32.gmra.mxu0 %v610
    %v707 = vpop.f32.mrf.mxu0
    %v708 = vadd.f32 0.0, %v707
    %709 = vmatmul.f32.gmra.mxu0 %v611
    %v710 = vpop.f32.mrf.mxu0
    %v711 = vadd.f32 0.0, %v710
    %712 = vmatmul.f32.gmra.mxu0 %v612
    %v713 = vpop.f32.mrf.mxu0
    %v714 = vadd.f32 0.0, %v713
    %715 = vmatmul.f32.gmra.mxu0 %v613
    %v716 = vpop.f32.mrf.mxu0
    %v717 = vadd.f32 0.0, %v716
    %718 = vmatmul.f32.gmra.mxu0 %v614
    %v719 = vpop.f32.mrf.mxu0
    %v720 = vadd.f32 0.0, %v719
    %721 = vmatmul.f32.gmra.mxu0 %v615
    %v722 = vpop.f32.mrf.mxu0
    %v723 = vadd.f32 0.0, %v722
    %724 = vmatmul.f32.gmra.mxu0 %v616
    %v725 = vpop.f32.mrf.mxu0
    %v726 = vadd.f32 0.0, %v725
    %727 = vmatmul.f32.gmra.mxu0 %v617
    %v728 = vpop.f32.mrf.mxu0
    %v729 = vadd.f32 0.0, %v728
    %730 = vmatmul.f32.gmra.mxu0 %v618
    %v731 = vpop.f32.mrf.mxu0
    %v732 = vadd.f32 0.0, %v731
    %733 = vmatmul.f32.gmra.mxu0 %v619
    %v734 = vpop.f32.mrf.mxu0
    %v735 = vadd.f32 0.0, %v734
    %736 = vmatmul.f32.gmra.mxu0 %v620
    %v737 = vpop.f32.mrf.mxu0
    %v738 = vadd.f32 0.0, %v737
    %739 = vmatmul.f32.gmra.mxu0 %v621
    %v740 = vpop.f32.mrf.mxu0
    %v741 = vadd.f32 0.0, %v740
    %742 = vmatmul.f32.gmra.mxu0 %v622
    %v743 = vpop.f32.mrf.mxu0
    %v744 = vadd.f32 0.0, %v743
    %745 = vmatmul.f32.gmra.mxu0 %v623
    %v746 = vpop.f32.mrf.mxu0
    %v747 = vadd.f32 0.0, %v746
    %748 = vmatmul.f32.gmra.mxu0 %v624
    %v749 = vpop.f32.mrf.mxu0
    %v750 = vadd.f32 0.0, %v749
    %751 = vmatmul.f32.gmra.mxu0 %v625
    %v752 = vpop.f32.mrf.mxu0
    %v753 = vadd.f32 0.0, %v752
    %754 = vdwg.mxu0
    %v755 = vadd.f32 %v562, %v660
    %v756 = vadd.f32 %v563, %v663
    %v757 = vadd.f32 %v564, %v666
    %v758 = vadd.f32 %v565, %v669
    %v759 = vadd.f32 %v566, %v672
    %v760 = vadd.f32 %v567, %v675
    %v761 = vadd.f32 %v568, %v678
    %v762 = vadd.f32 %v569, %v681
    %v763 = vadd.f32 %v570, %v684
    %v764 = vadd.f32 %v571, %v687
    %v765 = vadd.f32 %v572, %v690
    %v766 = vadd.f32 %v573, %v693
    %v767 = vadd.f32 %v574, %v696
    %v768 = vadd.f32 %v575, %v699
    %v769 = vadd.f32 %v576, %v702
    %v770 = vadd.f32 %v577, %v705
    %v771 = vadd.f32 %v578, %v708
    %v772 = vadd.f32 %v579, %v711
    %v773 = vadd.f32 %v580, %v714
    %v774 = vadd.f32 %v581, %v717
    %v775 = vadd.f32 %v582, %v720
    %v776 = vadd.f32 %v583, %v723
    %v777 = vadd.f32 %v584, %v726
    %v778 = vadd.f32 %v585, %v729
    %v779 = vadd.f32 %v586, %v732
    %v780 = vadd.f32 %v587, %v735
    %v781 = vadd.f32 %v588, %v738
    %v782 = vadd.f32 %v589, %v741
    %v783 = vadd.f32 %v590, %v744
    %v784 = vadd.f32 %v591, %v747
    %v785 = vadd.f32 %v592, %v750
    %v786 = vadd.f32 %v593, %v753
    %v787 = vld [vmem:[#allocation2 + $0x4] sm:$0xff]
    %v788 = vld [vmem:[#allocation2 + $0xc] sm:$0xff]
    %v789 = vld [vmem:[#allocation2 + $0x14] sm:$0xff]
    %v790 = vld [vmem:[#allocation2 + $0x1c] sm:$0xff]
    %v791 = vld [vmem:[#allocation2 + $0x24] sm:$0xff]
    %v792 = vld [vmem:[#allocation2 + $0x2c] sm:$0xff]
    %v793 = vld [vmem:[#allocation2 + $0x34] sm:$0xff]
    %v794 = vld [vmem:[#allocation2 + $0x3c] sm:$0xff]
    %v795 = vld [vmem:[#allocation2 + $0x44] sm:$0xff]
    %v796 = vld [vmem:[#allocation2 + $0x4c] sm:$0xff]
    %v797 = vld [vmem:[#allocation2 + $0x54] sm:$0xff]
    %v798 = vld [vmem:[#allocation2 + $0x5c] sm:$0xff]
    %v799 = vld [vmem:[#allocation2 + $0x64] sm:$0xff]
    %v800 = vld [vmem:[#allocation2 + $0x6c] sm:$0xff]
    %v801 = vld [vmem:[#allocation2 + $0x74] sm:$0xff]
    %v802 = vld [vmem:[#allocation2 + $0x7c] sm:$0xff]
    %v803 = vld [vmem:[#allocation2 + $0x84] sm:$0xff]
    %v804 = vld [vmem:[#allocation2 + $0x8c] sm:$0xff]
    %v805 = vld [vmem:[#allocation2 + $0x94] sm:$0xff]
    %v806 = vld [vmem:[#allocation2 + $0x9c] sm:$0xff]
    %v807 = vld [vmem:[#allocation2 + $0xa4] sm:$0xff]
    %v808 = vld [vmem:[#allocation2 + $0xac] sm:$0xff]
    %v809 = vld [vmem:[#allocation2 + $0xb4] sm:$0xff]
    %v810 = vld [vmem:[#allocation2 + $0xbc] sm:$0xff]
    %v811 = vld [vmem:[#allocation2 + $0xc4] sm:$0xff]
    %v812 = vld [vmem:[#allocation2 + $0xcc] sm:$0xff]
    %v813 = vld [vmem:[#allocation2 + $0xd4] sm:$0xff]
    %v814 = vld [vmem:[#allocation2 + $0xdc] sm:$0xff]
    %v815 = vld [vmem:[#allocation2 + $0xe4] sm:$0xff]
    %v816 = vld [vmem:[#allocation2 + $0xec] sm:$0xff]
    %v817 = vld [vmem:[#allocation2 + $0xf4] sm:$0xff]
    %v818 = vld [vmem:[#allocation2 + $0xfc] sm:$0xff]
    %v819 = vld [vmem:[#allocation5 + $0x200] sm:$0xff]
    %v820 = vld [vmem:[#allocation5 + $0x208] sm:$0xff]
    %v821 = vld [vmem:[#allocation5 + $0x210] sm:$0xff]
    %v822 = vld [vmem:[#allocation5 + $0x218] sm:$0xff]
    %v823 = vld [vmem:[#allocation5 + $0x220] sm:$0xff]
    %v824 = vld [vmem:[#allocation5 + $0x228] sm:$0xff]
    %v825 = vld [vmem:[#allocation5 + $0x230] sm:$0xff]
    %v826 = vld [vmem:[#allocation5 + $0x238] sm:$0xff]
    %v827 = vld [vmem:[#allocation5 + $0x240] sm:$0xff]
    %v828 = vld [vmem:[#allocation5 + $0x248] sm:$0xff]
    %v829 = vld [vmem:[#allocation5 + $0x250] sm:$0xff]
    %v830 = vld [vmem:[#allocation5 + $0x258] sm:$0xff]
    %v831 = vld [vmem:[#allocation5 + $0x260] sm:$0xff]
    %v832 = vld [vmem:[#allocation5 + $0x268] sm:$0xff]
    %v833 = vld [vmem:[#allocation5 + $0x270] sm:$0xff]
    %v834 = vld [vmem:[#allocation5 + $0x278] sm:$0xff]
    %835 = vmatpush.msra.mxu0 %v834
    %836 = vmatpush.msra.mxu0 %v833
    %837 = vmatpush.msra.mxu0 %v832
    %838 = vmatpush.msra.mxu0 %v831
    %839 = vmatpush.msra.mxu0 %v830
    %840 = vmatpush.msra.mxu0 %v829
    %841 = vmatpush.msra.mxu0 %v828
    %842 = vmatpush.msra.mxu0 %v827
    %843 = vmatpush.msra.mxu0 %v826
    %844 = vmatpush.msra.mxu0 %v825
    %845 = vmatpush.msra.mxu0 %v824
    %846 = vmatpush.msra.mxu0 %v823
    %847 = vmatpush.msra.mxu0 %v822
    %848 = vmatpush.msra.mxu0 %v821
    %849 = vmatpush.msra.mxu0 %v820
    %850 = vmatpush.msra.mxu0 %v819
    %851 = vmatmul.f32.gmra.mxu0 %v787
    %v852 = vpop.f32.mrf.mxu0
    %v853 = vadd.f32 0.0, %v852
    %854 = vmatmul.f32.gmra.mxu0 %v788
    %v855 = vpop.f32.mrf.mxu0
    %v856 = vadd.f32 0.0, %v855
    %857 = vmatmul.f32.gmra.mxu0 %v789
    %v858 = vpop.f32.mrf.mxu0
    %v859 = vadd.f32 0.0, %v858
    %860 = vmatmul.f32.gmra.mxu0 %v790
    %v861 = vpop.f32.mrf.mxu0
    %v862 = vadd.f32 0.0, %v861
    %863 = vmatmul.f32.gmra.mxu0 %v791
    %v864 = vpop.f32.mrf.mxu0
    %v865 = vadd.f32 0.0, %v864
    %866 = vmatmul.f32.gmra.mxu0 %v792
    %v867 = vpop.f32.mrf.mxu0
    %v868 = vadd.f32 0.0, %v867
    %869 = vmatmul.f32.gmra.mxu0 %v793
    %v870 = vpop.f32.mrf.mxu0
    %v871 = vadd.f32 0.0, %v870
    %872 = vmatmul.f32.gmra.mxu0 %v794
    %v873 = vpop.f32.mrf.mxu0
    %v874 = vadd.f32 0.0, %v873
    %875 = vmatmul.f32.gmra.mxu0 %v795
    %v876 = vpop.f32.mrf.mxu0
    %v877 = vadd.f32 0.0, %v876
    %878 = vmatmul.f32.gmra.mxu0 %v796
    %v879 = vpop.f32.mrf.mxu0
    %v880 = vadd.f32 0.0, %v879
    %881 = vmatmul.f32.gmra.mxu0 %v797
    %v882 = vpop.f32.mrf.mxu0
    %v883 = vadd.f32 0.0, %v882
    %884 = vmatmul.f32.gmra.mxu0 %v798
    %v885 = vpop.f32.mrf.mxu0
    %v886 = vadd.f32 0.0, %v885
    %887 = vmatmul.f32.gmra.mxu0 %v799
    %v888 = vpop.f32.mrf.mxu0
    %v889 = vadd.f32 0.0, %v888
    %890 = vmatmul.f32.gmra.mxu0 %v800
    %v891 = vpop.f32.mrf.mxu0
    %v892 = vadd.f32 0.0, %v891
    %893 = vmatmul.f32.gmra.mxu0 %v801
    %v894 = vpop.f32.mrf.mxu0
    %v895 = vadd.f32 0.0, %v894
    %896 = vmatmul.f32.gmra.mxu0 %v802
    %v897 = vpop.f32.mrf.mxu0
    %v898 = vadd.f32 0.0, %v897
    %899 = vmatmul.f32.gmra.mxu0 %v803
    %v900 = vpop.f32.mrf.mxu0
    %v901 = vadd.f32 0.0, %v900
    %902 = vmatmul.f32.gmra.mxu0 %v804
    %v903 = vpop.f32.mrf.mxu0
    %v904 = vadd.f32 0.0, %v903
    %905 = vmatmul.f32.gmra.mxu0 %v805
    %v906 = vpop.f32.mrf.mxu0
    %v907 = vadd.f32 0.0, %v906
    %908 = vmatmul.f32.gmra.mxu0 %v806
    %v909 = vpop.f32.mrf.mxu0
    %v910 = vadd.f32 0.0, %v909
    %911 = vmatmul.f32.gmra.mxu0 %v807
    %v912 = vpop.f32.mrf.mxu0
    %v913 = vadd.f32 0.0, %v912
    %914 = vmatmul.f32.gmra.mxu0 %v808
    %v915 = vpop.f32.mrf.mxu0
    %v916 = vadd.f32 0.0, %v915
    %917 = vmatmul.f32.gmra.mxu0 %v809
    %v918 = vpop.f32.mrf.mxu0
    %v919 = vadd.f32 0.0, %v918
    %920 = vmatmul.f32.gmra.mxu0 %v810
    %v921 = vpop.f32.mrf.mxu0
    %v922 = vadd.f32 0.0, %v921
    %923 = vmatmul.f32.gmra.mxu0 %v811
    %v924 = vpop.f32.mrf.mxu0
    %v925 = vadd.f32 0.0, %v924
    %926 = vmatmul.f32.gmra.mxu0 %v812
    %v927 = vpop.f32.mrf.mxu0
    %v928 = vadd.f32 0.0, %v927
    %929 = vmatmul.f32.gmra.mxu0 %v813
    %v930 = vpop.f32.mrf.mxu0
    %v931 = vadd.f32 0.0, %v930
    %932 = vmatmul.f32.gmra.mxu0 %v814
    %v933 = vpop.f32.mrf.mxu0
    %v934 = vadd.f32 0.0, %v933
    %935 = vmatmul.f32.gmra.mxu0 %v815
    %v936 = vpop.f32.mrf.mxu0
    %v937 = vadd.f32 0.0, %v936
    %938 = vmatmul.f32.gmra.mxu0 %v816
    %v939 = vpop.f32.mrf.mxu0
    %v940 = vadd.f32 0.0, %v939
    %941 = vmatmul.f32.gmra.mxu0 %v817
    %v942 = vpop.f32.mrf.mxu0
    %v943 = vadd.f32 0.0, %v942
    %944 = vmatmul.f32.gmra.mxu0 %v818
    %v945 = vpop.f32.mrf.mxu0
    %v946 = vadd.f32 0.0, %v945
    %947 = vdwg.mxu0
    %v948 = vadd.f32 %v755, %v853
    %v949 = vadd.f32 %v756, %v856
    %v950 = vadd.f32 %v757, %v859
    %v951 = vadd.f32 %v758, %v862
    %v952 = vadd.f32 %v759, %v865
    %v953 = vadd.f32 %v760, %v868
    %v954 = vadd.f32 %v761, %v871
    %v955 = vadd.f32 %v762, %v874
    %v956 = vadd.f32 %v763, %v877
    %v957 = vadd.f32 %v764, %v880
    %v958 = vadd.f32 %v765, %v883
    %v959 = vadd.f32 %v766, %v886
    %v960 = vadd.f32 %v767, %v889
    %v961 = vadd.f32 %v768, %v892
    %v962 = vadd.f32 %v769, %v895
    %v963 = vadd.f32 %v770, %v898
    %v964 = vadd.f32 %v771, %v901
    %v965 = vadd.f32 %v772, %v904
    %v966 = vadd.f32 %v773, %v907
    %v967 = vadd.f32 %v774, %v910
    %v968 = vadd.f32 %v775, %v913
    %v969 = vadd.f32 %v776, %v916
    %v970 = vadd.f32 %v777, %v919
    %v971 = vadd.f32 %v778, %v922
    %v972 = vadd.f32 %v779, %v925
    %v973 = vadd.f32 %v780, %v928
    %v974 = vadd.f32 %v781, %v931
    %v975 = vadd.f32 %v782, %v934
    %v976 = vadd.f32 %v783, %v937
    %v977 = vadd.f32 %v784, %v940
    %v978 = vadd.f32 %v785, %v943
    %v979 = vadd.f32 %v786, %v946
    %v980 = vld [vmem:[#allocation8] sm:$0x1]
    %v981 = vperm.slane %v980, 0
    %v982 = vadd.f32 %v948, %v981
    %v983 = vadd.f32 %v949, %v981
    %v984 = vadd.f32 %v950, %v981
    %v985 = vadd.f32 %v951, %v981
    %v986 = vadd.f32 %v952, %v981
    %v987 = vadd.f32 %v953, %v981
    %v988 = vadd.f32 %v954, %v981
    %v989 = vadd.f32 %v955, %v981
    %v990 = vadd.f32 %v956, %v981
    %v991 = vadd.f32 %v957, %v981
    %v992 = vadd.f32 %v958, %v981
    %v993 = vadd.f32 %v959, %v981
    %v994 = vadd.f32 %v960, %v981
    %v995 = vadd.f32 %v961, %v981
    %v996 = vadd.f32 %v962, %v981
    %v997 = vadd.f32 %v963, %v981
    %v998 = vadd.f32 %v964, %v981
    %v999 = vadd.f32 %v965, %v981
    %v1000 = vadd.f32 %v966, %v981
    %v1001 = vadd.f32 %v967, %v981
    %v1002 = vadd.f32 %v968, %v981
    %v1003 = vadd.f32 %v969, %v981
    %v1004 = vadd.f32 %v970, %v981
    %v1005 = vadd.f32 %v971, %v981
    %v1006 = vadd.f32 %v972, %v981
    %v1007 = vadd.f32 %v973, %v981
    %v1008 = vadd.f32 %v974, %v981
    %v1009 = vadd.f32 %v975, %v981
    %v1010 = vadd.f32 %v976, %v981
    %v1011 = vadd.f32 %v977, %v981
    %v1012 = vadd.f32 %v978, %v981
    %v1013 = vadd.f32 %v979, %v981
    %v1014 = vmax.f32 %v982, 0.0
    %v1015 = vmax.f32 %v983, 0.0
    %v1016 = vmax.f32 %v984, 0.0
    %v1017 = vmax.f32 %v985, 0.0
    %v1018 = vmax.f32 %v986, 0.0
    %v1019 = vmax.f32 %v987, 0.0
    %v1020 = vmax.f32 %v988, 0.0
    %v1021 = vmax.f32 %v989, 0.0
    %v1022 = vmax.f32 %v990, 0.0
    %v1023 = vmax.f32 %v991, 0.0
    %v1024 = vmax.f32 %v992, 0.0
    %v1025 = vmax.f32 %v993, 0.0
    %v1026 = vmax.f32 %v994, 0.0
    %v1027 = vmax.f32 %v995, 0.0
    %v1028 = vmax.f32 %v996, 0.0
    %v1029 = vmax.f32 %v997, 0.0
    %v1030 = vmax.f32 %v998, 0.0
    %v1031 = vmax.f32 %v999, 0.0
    %v1032 = vmax.f32 %v1000, 0.0
    %v1033 = vmax.f32 %v1001, 0.0
    %v1034 = vmax.f32 %v1002, 0.0
    %v1035 = vmax.f32 %v1003, 0.0
    %v1036 = vmax.f32 %v1004, 0.0
    %v1037 = vmax.f32 %v1005, 0.0
    %v1038 = vmax.f32 %v1006, 0.0
    %v1039 = vmax.f32 %v1007, 0.0
    %v1040 = vmax.f32 %v1008, 0.0
    %v1041 = vmax.f32 %v1009, 0.0
    %v1042 = vmax.f32 %v1010, 0.0
    %v1043 = vmax.f32 %v1011, 0.0
    %v1044 = vmax.f32 %v1012, 0.0
    %v1045 = vmax.f32 %v1013, 0.0
    %v1046 = vld [vmem:[#allocation7] sm:$0xff]
    %v1047 = vld [vmem:[#allocation7 + $0x8] sm:$0xff]
    %v1048 = vld [vmem:[#allocation7 + $0x10] sm:$0xff]
    %v1049 = vld [vmem:[#allocation7 + $0x18] sm:$0xff]
    %v1050 = vld [vmem:[#allocation7 + $0x20] sm:$0xff]
    %v1051 = vld [vmem:[#allocation7 + $0x28] sm:$0xff]
    %v1052 = vld [vmem:[#allocation7 + $0x30] sm:$0xff]
    %v1053 = vld [vmem:[#allocation7 + $0x38] sm:$0xff]
    %v1054 = vld [vmem:[#allocation7 + $0x40] sm:$0xff]
    %v1055 = vld [vmem:[#allocation7 + $0x48] sm:$0xff]
    %v1056 = vld [vmem:[#allocation7 + $0x50] sm:$0xff]
    %v1057 = vld [vmem:[#allocation7 + $0x58] sm:$0xff]
    %v1058 = vld [vmem:[#allocation7 + $0x60] sm:$0xff]
    %v1059 = vld [vmem:[#allocation7 + $0x68] sm:$0xff]
    %v1060 = vld [vmem:[#allocation7 + $0x70] sm:$0xff]
    %v1061 = vld [vmem:[#allocation7 + $0x78] sm:$0xff]
    %v1062 = vld [vmem:[#allocation7 + $0x80] sm:$0xff]
    %v1063 = vld [vmem:[#allocation7 + $0x88] sm:$0xff]
    %v1064 = vld [vmem:[#allocation7 + $0x90] sm:$0xff]
    %v1065 = vld [vmem:[#allocation7 + $0x98] sm:$0xff]
    %v1066 = vld [vmem:[#allocation7 + $0xa0] sm:$0xff]
    %v1067 = vld [vmem:[#allocation7 + $0xa8] sm:$0xff]
    %v1068 = vld [vmem:[#allocation7 + $0xb0] sm:$0xff]
    %v1069 = vld [vmem:[#allocation7 + $0xb8] sm:$0xff]
    %v1070 = vld [vmem:[#allocation7 + $0xc0] sm:$0xff]
    %v1071 = vld [vmem:[#allocation7 + $0xc8] sm:$0xff]
    %v1072 = vld [vmem:[#allocation7 + $0xd0] sm:$0xff]
    %v1073 = vld [vmem:[#allocation7 + $0xd8] sm:$0xff]
    %v1074 = vld [vmem:[#allocation7 + $0xe0] sm:$0xff]
    %v1075 = vld [vmem:[#allocation7 + $0xe8] sm:$0xff]
    %v1076 = vld [vmem:[#allocation7 + $0xf0] sm:$0xff]
    %v1077 = vld [vmem:[#allocation7 + $0xf8] sm:$0xff]
    %v1078 = vmul.f32 %v1014, %v1046
    %v1079 = vmul.f32 %v1015, %v1047
    %v1080 = vmul.f32 %v1016, %v1048
    %v1081 = vmul.f32 %v1017, %v1049
    %v1082 = vmul.f32 %v1018, %v1050
    %v1083 = vmul.f32 %v1019, %v1051
    %v1084 = vmul.f32 %v1020, %v1052
    %v1085 = vmul.f32 %v1021, %v1053
    %v1086 = vmul.f32 %v1022, %v1054
    %v1087 = vmul.f32 %v1023, %v1055
    %v1088 = vmul.f32 %v1024, %v1056
    %v1089 = vmul.f32 %v1025, %v1057
    %v1090 = vmul.f32 %v1026, %v1058
    %v1091 = vmul.f32 %v1027, %v1059
    %v1092 = vmul.f32 %v1028, %v1060
    %v1093 = vmul.f32 %v1029, %v1061
    %v1094 = vmul.f32 %v1030, %v1062
    %v1095 = vmul.f32 %v1031, %v1063
    %v1096 = vmul.f32 %v1032, %v1064
    %v1097 = vmul.f32 %v1033, %v1065
    %v1098 = vmul.f32 %v1034, %v1066
    %v1099 = vmul.f32 %v1035, %v1067
    %v1100 = vmul.f32 %v1036, %v1068
    %v1101 = vmul.f32 %v1037, %v1069
    %v1102 = vmul.f32 %v1038, %v1070
    %v1103 = vmul.f32 %v1039, %v1071
    %v1104 = vmul.f32 %v1040, %v1072
    %v1105 = vmul.f32 %v1041, %v1073
    %v1106 = vmul.f32 %v1042, %v1074
    %v1107 = vmul.f32 %v1043, %v1075
    %v1108 = vmul.f32 %v1044, %v1076
    %v1109 = vmul.f32 %v1045, %v1077
    %v1110 = vmax.f32 %v1078, %v1079
    %v1111 = vmax.f32 %v1110, %v1080
    %v1112 = vmax.f32 %v1111, %v1081
    %v1113 = vrot.slane %v1112, 4
    %v1114 = vmax.f32 %v1112, %v1113
    %v1115 = vrot.slane %v1114, 2
    %v1116 = vmax.f32 %v1114, %v1115
    %v1117 = vrot.slane %v1116, 1
    %v1118 = vmax.f32 %v1116, %v1117
    %v1119 = vmax.f32 %v1082, %v1083
    %v1120 = vmax.f32 %v1119, %v1084
    %v1121 = vmax.f32 %v1120, %v1085
    %v1122 = vrot.slane %v1121, 4
    %v1123 = vmax.f32 %v1121, %v1122
    %v1124 = vrot.slane %v1123, 2
    %v1125 = vmax.f32 %v1123, %v1124
    %v1126 = vrot.slane %v1125, 1
    %v1127 = vmax.f32 %v1125, %v1126
    %v1128 = vmax.f32 %v1086, %v1087
    %v1129 = vmax.f32 %v1128, %v1088
    %v1130 = vmax.f32 %v1129, %v1089
    %v1131 = vrot.slane %v1130, 4
    %v1132 = vmax.f32 %v1130, %v1131
    %v1133 = vrot.slane %v1132, 2
    %v1134 = vmax.f32 %v1132, %v1133
    %v1135 = vrot.slane %v1134, 1
    %v1136 = vmax.f32 %v1134, %v1135
    %v1137 = vmax.f32 %v1090, %v1091
    %v1138 = vmax.f32 %v1137, %v1092
    %v1139 = vmax.f32 %v1138, %v1093
    %v1140 = vrot.slane %v1139, 4
    %v1141 = vmax.f32 %v1139, %v1140
    %v1142 = vrot.slane %v1141, 2
    %v1143 = vmax.f32 %v1141, %v1142
    %v1144 = vrot.slane %v1143, 1
    %v1145 = vmax.f32 %v1143, %v1144
    %v1146 = vmax.f32 %v1094, %v1095
    %v1147 = vmax.f32 %v1146, %v1096
    %v1148 = vmax.f32 %v1147, %v1097
    %v1149 = vrot.slane %v1148, 4
    %v1150 = vmax.f32 %v1148, %v1149
    %v1151 = vrot.slane %v1150, 2
    %v1152 = vmax.f32 %v1150, %v1151
    %v1153 = vrot.slane %v1152, 1
    %v1154 = vmax.f32 %v1152, %v1153
    %v1155 = vmax.f32 %v1098, %v1099
    %v1156 = vmax.f32 %v1155, %v1100
    %v1157 = vmax.f32 %v1156, %v1101
    %v1158 = vrot.slane %v1157, 4
    %v1159 = vmax.f32 %v1157, %v1158
    %v1160 = vrot.slane %v1159, 2
    %v1161 = vmax.f32 %v1159, %v1160
    %v1162 = vrot.slane %v1161, 1
    %v1163 = vmax.f32 %v1161, %v1162
    %v1164 = vmax.f32 %v1102, %v1103
    %v1165 = vmax.f32 %v1164, %v1104
    %v1166 = vmax.f32 %v1165, %v1105
    %v1167 = vrot.slane %v1166, 4
    %v1168 = vmax.f32 %v1166, %v1167
    %v1169 = vrot.slane %v1168, 2
    %v1170 = vmax.f32 %v1168, %v1169
    %v1171 = vrot.slane %v1170, 1
    %v1172 = vmax.f32 %v1170, %v1171
    %v1173 = vmax.f32 %v1106, %v1107
    %v1174 = vmax.f32 %v1173, %v1108
    %v1175 = vmax.f32 %v1174, %v1109
    %v1176 = vrot.slane %v1175, 4
    %v1177 = vmax.f32 %v1175, %v1176
    %v1178 = vrot.slane %v1177, 2
    %v1179 = vmax.f32 %v1177, %v1178
    %v1180 = vrot.slane %v1179, 1
    %v1181 = vmax.f32 %v1179, %v1180
    %v1182 = vld [vmem:[#allocation8 + $0x1] sm:$0x1]
    %v1183 = vperm.slane %v1182, 0
    %v1184 = vmul.f32 %v1118, %v1183
    %v1185 = vmul.f32 %v1127, %v1183
    %v1186 = vmul.f32 %v1136, %v1183
    %v1187 = vmul.f32 %v1145, %v1183
    %v1188 = vmul.f32 %v1154, %v1183
    %v1189 = vmul.f32 %v1163, %v1183
    %v1190 = vmul.f32 %v1172, %v1183
    %v1191 = vmul.f32 %v1181, %v1183
    %v1200 = vrot.slane %v1185, 7
    %vm1201 = vcmask 1041409
    %v1202 = vsel %vm1201, %v1200, %v1184
    %v1203 = vrot.slane %v1186, 6
    %vm1204 = vcmask 1042434
    %v1205 = vsel %vm1204, %v1203, %v1202
    %v1206 = vrot.slane %v1187, 5
    %vm1207 = vcmask 1043459
    %v1208 = vsel %vm1207, %v1206, %v1205
    %v1209 = vrot.slane %v1188, 4
    %vm1210 = vcmask 1044484
    %v1211 = vsel %vm1210, %v1209, %v1208
    %v1212 = vrot.slane %v1189, 3
    %vm1213 = vcmask 1045509
    %v1214 = vsel %vm1213, %v1212, %v1211
    %v1215 = vrot.slane %v1190, 2
    %vm1216 = vcmask 1046534
    %v1217 = vsel %vm1216, %v1215, %v1214
    %v1218 = vrot.slane %v1191, 1
    %vm1219 = vcmask 1047559
    %v1220 = vsel %vm1219, %v1218, %v1217
    %1222 = vadd.xlane.f32.xlu0 %v1220
    %v1223 = vpop.xlane.xlu0 %1222
    %v1224 = vld [vmem:[#allocation8 + $0x2] sm:$0x1]
    %v1225 = vperm.slane %v1224, 0
    %v1226 = vadd.f32 %v1223, %v1225
    %1228 = vset.pattern.permute.xlu0 0
    %1229 = vperm.xlu0 %1228, %v1226
    %v1230 = vpop.permute.xlu0 %1229
    %1232 = vst [vmem:[#allocation10] sm:$0xff] %v1230
    // Predicated region
    $region34: #{tpu_custom_call.1} parent=1 // pred_check
      _
    $region35: #{tpu_custom_call.1} parent=1 // pred_check_branch
      %1234 = sbr.rel (0) target = $region37
    $region36: #{tpu_custom_call.1} parent=1 // pred_region
      %1236 = vsyncadd [#allocation4], 0
      %s1238 = sshll.u32 [#allocation10], 4
      %s1239 = int_to_ptr.vmem [resolvable:$true] %s1238
      %s1240 = sshll.u32 %s4, 4
      %s1241 = int_to_ptr.hbm [resolvable:$true] %s1240
      %1243 = dma.vmem_to_hbm [thread:$0]  %s1239, 128, %s1241, [#allocation4]
    $region37: #{tpu_custom_call.1} parent=1 // pred_fallthru
      _
    // Predicated region
    $region38: #{tpu_custom_call.1} parent=1 // pred_check
      _
    $region39: #{tpu_custom_call.1} parent=1 // pred_check_branch
      %1245 = sbr.rel (0) target = $region41
    $region40: #{tpu_custom_call.1} parent=1 // pred_region
      %1247 = dma.done [#allocation4], 128
    $region41: #{tpu_custom_call.1} parent=1 // pred_fallthru
      _
    %1248 = vsyncpa [#allocation3], 1
    %1249 = vsyncpa [#allocation6], 1
    %1250 = vsyncpa [#allocation9], 1
    %1251 = vsyncpa [#allocation4], 1

</llo_original>
